<compile_context>
chip_gen: v5e
topology: v5e:2x2
jax: 0.10.0
libtpu: 0.0.40
codegen_flags: <defaults>
</compile_context>

<pallas_src>
import functools

import jax
import jax.numpy as jnp
from jax.experimental import pallas as pl
from jax.experimental.pallas import tpu as pltpu

GAMMA_NEG = 4
GAMMA_POS = 1
CLIP = 0.05
EPS = 1e-08

_LANE = 128
_SUBLANE_PACK = 32        # block_b multiple; safe for f32 / bf16 / int8 tiles
_MAX_BLOCK_C = 8192       # lane-dense column chunk for very large class counts
_X_PAD_VALUE = -30.0      # sigmoid(-30) ~ 0  =>  padded elements contribute exactly 0


def _round_up(n, m):
    return ((n + m - 1) // m) * m


def _tpu_budgets():
    """(target combined x+y bytes per grid step, scoped-VMEM cap) per TPU generation."""
    try:
        vmem = int(pltpu.get_tpu_info().vmem_capacity_bytes)
    except Exception:  # conservative fallback if the query is unavailable
        vmem = 64 * 2**20
    if vmem <= 64 * 2**20:            # v7x-class: 64 MiB VMEM per TensorCore
        return 6 * 2**20, 30 * 2**20
    return 12 * 2**20, 40 * 2**20     # v5e / v6e: 128 MiB VMEM


def _asl_kernel(*refs, num_inner, num_c, has_weights, binary_targets):
    if has_weights:
        x_ref, y_ref, w_ref, out_ref, acc_ref = refs
    else:
        x_ref, y_ref, out_ref, acc_ref = refs
        w_ref = None

    i = pl.program_id(1)      # batch-tile index within this partition
    j = pl.program_id(2)      # column-tile index

    @pl.when(jnp.logical_and(i == 0, j == 0))
    def _():
        acc_ref[...] = jnp.zeros_like(acc_ref)

    x = x_ref[...].astype(jnp.float32)
    y = y_ref[...].astype(jnp.float32)

    # sigmoid(x): one EUP exp + approx reciprocal + one Newton step (keeps f32 accuracy
    # while avoiding the full exact-divide Newton chain on the VPU).
    e = jnp.exp(-jnp.maximum(x, -88.0))        # clamp keeps e finite
    d = 1.0 + e
    r = pl.reciprocal(d, approx=True)
    xs_pos = r * (2.0 - d * r)                 # ~1e-7 relative error
    xs_neg = 1.0 - xs_pos
    xs_neg_c = jnp.minimum(xs_neg + CLIP, 1.0)

    t = 1.0 - xs_neg_c
    t2 = t * t
    mod_neg = t2 * t2                          # (1 - xs_neg_c) ** 4, pure VPU

    if binary_targets:
        # Hard {0,1} labels: one log instead of two (2 EUP transcendentals / element).
        pos = y > 0.5
        arg = jnp.where(pos, xs_pos, xs_neg_c)
        mod = jnp.where(pos, xs_neg, mod_neg)  # mod_pos = xs_neg since gamma_pos == 1
        loss = mod * jnp.log(jnp.maximum(arg, EPS))
    else:
        los_pos = y * jnp.log(jnp.maximum(xs_pos, EPS))
        los_neg = (1.0 - y) * jnp.log(jnp.maximum(xs_neg_c, EPS))
        loss = xs_neg * los_pos + mod_neg * los_neg

    if has_weights:
        loss = loss * w_ref[...].astype(jnp.float32)

    # Fold rows into the small (8, block_c) accumulator: pure vreg-wise VPU adds,
    # no full-tile accumulator read-modify-write, no per-step cross-lane reduce.
    bb, bc = loss.shape
    acc_ref[...] += loss.reshape(bb // 8, 8, bc).sum(axis=0)

    @pl.when(jnp.logical_and(i == num_inner - 1, j == num_c - 1))
    def _():
        # Single cross-lane reduction per partition; one-hot (8,128) output block.
        total = jnp.sum(acc_ref[...])
        rr = jax.lax.broadcasted_iota(jnp.int32, (8, _LANE), 0)
        cc = jax.lax.broadcasted_iota(jnp.int32, (8, _LANE), 1)
        out_ref[...] = jnp.where(jnp.logical_and(rr == 0, cc == 0), total, 0.0)


def asymmetric_loss(x, y, weights=None, binary_targets=False):
    """-mean of the asymmetric focal loss over all B*C elements (AsymmetricLoss.forward).

    x, y may be f32 / bf16 (y may also be an integer / bool label array); they are cast
    to f32 inside the kernel. Set binary_targets=True only for hard {0,1} labels.
    """
    B, C = x.shape
    assert y.shape == (B, C)

    target_step_bytes, vmem_cap = _tpu_budgets()

    # ---- column (lane) tiling -------------------------------------------------
    C_pad = _round_up(max(C, _LANE), _LANE)
    block_c = min(C_pad, _MAX_BLOCK_C)
    C_pad = _round_up(C_pad, block_c)
    num_c = C_pad // block_c

    # ---- batch (sublane) tiling: size by combined x+y bytes per grid step ------
    bytes_per_el = jnp.dtype(x.dtype).itemsize + jnp.dtype(y.dtype).itemsize
    rows = target_step_bytes // (bytes_per_el * block_c)
    rows = max(_SUBLANE_PACK, (rows // _SUBLANE_PACK) * _SUBLANE_PACK)
    block_b = min(rows, _round_up(B, _SUBLANE_PACK))

    B_pad = _round_up(B, block_b)
    num_tiles = B_pad // block_b
    if num_tiles >= 2 and num_tiles % 2 == 1:
        # Always engage both TensorCores on v7x: pad up to an even tile count
        # (the extra tile is all-padding and contributes exactly 0).
        num_tiles += 1
        B_pad = num_tiles * block_b
    n_par = 2 if num_tiles >= 2 else 1
    num_inner = num_tiles // n_par

    # ---- weights --------------------------------------------------------------
    has_weights = weights is not None
    if has_weights:
        w_arr = jnp.asarray(weights, jnp.float32).reshape(-1)
        has_weights = w_arr.size > 1          # PyTorch default ones(1) -> unweighted path
        if has_weights:
            assert w_arr.size == C, "per-class weights must have length C"

    # ---- padding: x -> -30, y -> 0  =>  padded elements' loss is exactly 0 -----
    def _pad(a, val):
        pb, pc = B_pad - B, C_pad - C
        if pb == 0 and pc == 0:
            return a
        return jnp.pad(a, ((0, pb), (0, pc)), constant_values=val)

    args = [_pad(x, _X_PAD_VALUE), _pad(y, 0)]
    in_specs = [
        pl.BlockSpec((block_b, block_c), lambda p, i, j: (p * num_inner + i, j)),
        pl.BlockSpec((block_b, block_c), lambda p, i, j: (p * num_inner + i, j)),
    ]
    if has_weights:
        w = jnp.pad(w_arr.reshape(1, C), ((0, 0), (0, C_pad - C)))
        args.append(w)
        in_specs.append(pl.BlockSpec((1, block_c), lambda p, i, j: (0, j)))

    kernel = functools.partial(
        _asl_kernel,
        num_inner=num_inner, num_c=num_c,
        has_weights=has_weights, binary_targets=binary_targets,
    )

    # ---- scoped VMEM from real block byte sizes (x2 pipeline buffers) ----------
    x_tile = block_b * block_c * jnp.dtype(x.dtype).itemsize
    y_tile = block_b * block_c * jnp.dtype(y.dtype).itemsize
    w_tile = block_c * 4 if has_weights else 0
    out_tile = 8 * _LANE * 4
    acc_bytes = 8 * block_c * 4
    need = 2 * (x_tile + y_tile + w_tile + out_tile) + acc_bytes
    vmem_limit = int(min(vmem_cap, max(8 * 2**20, int(1.5 * need) + (1 << 20))))

    partials = pl.pallas_call(
        kernel,
        out_shape=jax.ShapeDtypeStruct((8 * n_par, _LANE), jnp.float32),
        grid_spec=pltpu.PrefetchScalarGridSpec(
            num_scalar_prefetch=0,
            grid=(n_par, num_inner, num_c),
            in_specs=in_specs,
            out_specs=pl.BlockSpec((8, _LANE), lambda p, i, j: (p, 0)),
            scratch_shapes=[pltpu.VMEM((8, block_c), jnp.float32)],
        ),
        compiler_params=pltpu.CompilerParams(
            dimension_semantics=("parallel", "arbitrary", "arbitrary"),
            vmem_limit_bytes=vmem_limit,
        ),
    )(*args)

    return -jnp.sum(partials) / (B * C)


def _reference(x, y, weights=None):
    x = jnp.asarray(x, jnp.float32)
    y = jnp.asarray(y, jnp.float32)
    x_sigmoid = jax.nn.sigmoid(x)
    xs_pos = x_sigmoid
    xs_neg = jnp.minimum(1.0 - x_sigmoid + CLIP, 1.0)
    los_pos = y * jnp.log(jnp.maximum(xs_pos, EPS))
    los_neg = (1.0 - y) * jnp.log(jnp.maximum(xs_neg, EPS))
    loss = (1.0 - xs_pos) ** GAMMA_POS * los_pos + (1.0 - xs_neg) ** GAMMA_NEG * los_neg
    if weights is not None and jnp.asarray(weights).size > 1:
        loss = loss * jnp.asarray(weights, jnp.float32).reshape(1, -1)
    return -jnp.mean(loss)


if __name__ == "__main__":
    key = jax.random.PRNGKey(0)
    kx, ky, kw, kx2, ky2 = jax.random.split(key, 5)

    # 1) default (unweighted, soft-target) path, lane-aligned shapes
    B, C = 16, 128
    x = jax.random.normal(kx, (B, C), dtype=jnp.float32)
    y = (jax.random.uniform(ky, (B, C)) > 0.5).astype(jnp.float32)
    out = asymmetric_loss(x, y)
    jax.block_until_ready(out)
    ref = _reference(x, y)
    assert jnp.allclose(out, ref, rtol=1e-5, atol=1e-5), (out, ref)

    # 2) per-class weights path (weights.shape != (1,) in the PyTorch module)
    w = jax.random.uniform(kw, (C,), minval=0.5, maxval=1.5)
    out_w = asymmetric_loss(x, y, w)
    jax.block_until_ready(out_w)
    ref_w = _reference(x, y, w)
    assert jnp.allclose(out_w, ref_w, rtol=1e-5, atol=1e-5), (out_w, ref_w)

    # 3) ragged shapes exercising the -30 / 0 padding (no in-kernel masks)
    B2, C2 = 12, 96
    x2 = jax.random.normal(kx2, (B2, C2), dtype=jnp.float32)
    y2 = (jax.random.uniform(ky2, (B2, C2)) > 0.5).astype(jnp.float32)
    out2 = asymmetric_loss(x2, y2)
    jax.block_until_ready(out2)
    ref2 = _reference(x2, y2)
    assert jnp.allclose(out2, ref2, rtol=1e-5, atol=1e-5), (out2, ref2)

    # 4) reduced-precision inputs (bf16) - half the HBM traffic, f32 math in-kernel
    x_bf = x.astype(jnp.bfloat16)
    y_bf = y.astype(jnp.bfloat16)
    out_bf = asymmetric_loss(x_bf, y_bf)
    jax.block_until_ready(out_bf)
    ref_bf = _reference(x_bf.astype(jnp.float32), y_bf.astype(jnp.float32))
    assert jnp.allclose(out_bf, ref_bf, rtol=1e-4, atol=1e-4), (out_bf, ref_bf)

    # 5) single-log path for hard {0,1} labels (fewer EUP transcendentals)
    out_bin = asymmetric_loss(x, y, binary_targets=True)
    jax.block_until_ready(out_bin)
    assert jnp.allclose(out_bin, ref, rtol=1e-5, atol=1e-5), (out_bin, ref)

    print("KERNEL_OK")
</pallas_src>

<mosaic_0001>
module attributes {stable_mosaic.version = 11 : i64} {
  func.func @_asl_kernel(%arg0: i32, %arg1: i32, %arg2: i32, %arg3: memref<32x128xf32, #tpu.memory_space<vmem>>, %arg4: memref<32x128xf32, #tpu.memory_space<vmem>>, %arg5: memref<8x128xf32, #tpu.memory_space<vmem>>, %arg6: memref<8x128xf32, #tpu.memory_space<vmem>>) attributes {dimension_semantics = [#tpu.dimension_semantics<parallel>, #tpu.dimension_semantics<arbitrary>, #tpu.dimension_semantics<arbitrary>], iteration_bounds = array<i64: 1, 1, 1>, scalar_prefetch = 0 : i64, scratch_operands = 1 : i64, tpu.core_type = #tpu.core_type<tc>, window_params = [{transform_indices = @transform_0, window_bounds = array<i64: 32, 128>}, {transform_indices = @transform_1, window_bounds = array<i64: 32, 128>}, {transform_indices = @transform_2, window_bounds = array<i64: 8, 128>}]} {
    %c0_i32 = arith.constant 0 : i32
    %0 = arith.cmpi eq, %arg1, %c0_i32 : i32
    %c0_i32_0 = arith.constant 0 : i32
    %1 = arith.cmpi eq, %arg2, %c0_i32_0 : i32
    %2 = arith.andi %0, %1 : i1
    %3 = arith.extui %2 : i1 to i32
    %c0_i32_1 = arith.constant 0 : i32
    %4 = arith.cmpi ne, %3, %c0_i32_1 : i32
    scf.if %4 {
      %cst_23 = arith.constant 0.000000e+00 : f32
      %52 = vector.broadcast %cst_23 : f32 to vector<8x128xf32>
      %c0_24 = arith.constant 0 : index
      %c0_25 = arith.constant 0 : index
      %53 = vector.load %arg6[%c0_24, %c0_25] : memref<8x128xf32, #tpu.memory_space<vmem>>, vector<8x128xf32>
      tpu.vector_store %arg6[%c0_24, %c0_25], %52 {strides = array<i32>} : memref<8x128xf32, #tpu.memory_space<vmem>>, vector<8x128xf32>,
    } else {
    }
    %c0 = arith.constant 0 : index
    %c0_2 = arith.constant 0 : index
    %5 = vector.load %arg3[%c0, %c0_2] : memref<32x128xf32, #tpu.memory_space<vmem>>, vector<32x128xf32>
    %c0_3 = arith.constant 0 : index
    %c0_4 = arith.constant 0 : index
    %6 = vector.load %arg4[%c0_3, %c0_4] : memref<32x128xf32, #tpu.memory_space<vmem>>, vector<32x128xf32>
    %cst = arith.constant -8.800000e+01 : f32
    %7 = vector.broadcast %cst : f32 to vector<32x128xf32>
    %8 = arith.maximumf %5, %7 : vector<32x128xf32>
    %cst_5 = arith.constant 0.000000e+00 : f32
    %9 = vector.broadcast %cst_5 : f32 to vector<32x128xf32>
    %10 = arith.subf %9, %8 : vector<32x128xf32>
    %11 = math.exp %10 : vector<32x128xf32>
    %cst_6 = arith.constant 1.000000e+00 : f32
    %12 = vector.broadcast %cst_6 : f32 to vector<32x128xf32>
    %13 = arith.addf %12, %11 : vector<32x128xf32>
    %14 = tpu.reciprocal %13 {approx = true} : vector<32x128xf32> -> vector<32x128xf32>
    %15 = arith.mulf %13, %14 : vector<32x128xf32>
    %cst_7 = arith.constant 2.000000e+00 : f32
    %16 = vector.broadcast %cst_7 : f32 to vector<32x128xf32>
    %17 = arith.subf %16, %15 : vector<32x128xf32>
    %18 = arith.mulf %14, %17 : vector<32x128xf32>
    %cst_8 = arith.constant 1.000000e+00 : f32
    %19 = vector.broadcast %cst_8 : f32 to vector<32x128xf32>
    %20 = arith.subf %19, %18 : vector<32x128xf32>
    %cst_9 = arith.constant 5.000000e-02 : f32
    %21 = vector.broadcast %cst_9 : f32 to vector<32x128xf32>
    %22 = arith.addf %20, %21 : vector<32x128xf32>
    %cst_10 = arith.constant 1.000000e+00 : f32
    %23 = vector.broadcast %cst_10 : f32 to vector<32x128xf32>
    %24 = arith.minimumf %22, %23 : vector<32x128xf32>
    %cst_11 = arith.constant 1.000000e+00 : f32
    %25 = vector.broadcast %cst_11 : f32 to vector<32x128xf32>
    %26 = arith.subf %25, %24 : vector<32x128xf32>
    %27 = arith.mulf %26, %26 : vector<32x128xf32>
    %28 = arith.mulf %27, %27 : vector<32x128xf32>
    %cst_12 = arith.constant 9.99999993E-9 : f32
    %29 = vector.broadcast %cst_12 : f32 to vector<32x128xf32>
    %30 = arith.maximumf %18, %29 : vector<32x128xf32>
    %31 = math.log %30 : vector<32x128xf32>
    %32 = arith.mulf %6, %31 : vector<32x128xf32>
    %cst_13 = arith.constant 1.000000e+00 : f32
    %33 = vector.broadcast %cst_13 : f32 to vector<32x128xf32>
    %34 = arith.subf %33, %6 : vector<32x128xf32>
    %cst_14 = arith.constant 9.99999993E-9 : f32
    %35 = vector.broadcast %cst_14 : f32 to vector<32x128xf32>
    %36 = arith.maximumf %24, %35 : vector<32x128xf32>
    %37 = math.log %36 : vector<32x128xf32>
    %38 = arith.mulf %34, %37 : vector<32x128xf32>
    %39 = arith.mulf %20, %32 : vector<32x128xf32>
    %40 = arith.mulf %28, %38 : vector<32x128xf32>
    %41 = arith.addf %39, %40 : vector<32x128xf32>
    %c0_15 = arith.constant 0 : index
    %c0_16 = arith.constant 0 : index
    %42 = vector.load %arg6[%c0_15, %c0_16] : memref<8x128xf32, #tpu.memory_space<vmem>>, vector<8x128xf32>
    %43 = vector.shape_cast %41 : vector<32x128xf32> to vector<4x8x128xf32>
    %cst_17 = arith.constant dense<0.000000e+00> : vector<8x128xf32>
    %44 = vector.multi_reduction <add>, %43, %cst_17 [0] : vector<4x8x128xf32> to vector<8x128xf32>
    %45 = arith.addf %42, %44 : vector<8x128xf32>
    %c0_18 = arith.constant 0 : index
    %c0_19 = arith.constant 0 : index
    %46 = vector.load %arg6[%c0_18, %c0_19] : memref<8x128xf32, #tpu.memory_space<vmem>>, vector<8x128xf32>
    tpu.vector_store %arg6[%c0_18, %c0_19], %45 {strides = array<i32>} : memref<8x128xf32, #tpu.memory_space<vmem>>, vector<8x128xf32>,
    %c0_i32_20 = arith.constant 0 : i32
    %47 = arith.cmpi eq, %arg1, %c0_i32_20 : i32
    %c0_i32_21 = arith.constant 0 : i32
    %48 = arith.cmpi eq, %arg2, %c0_i32_21 : i32
    %49 = arith.andi %47, %48 : i1
    %50 = arith.extui %49 : i1 to i32
    %c0_i32_22 = arith.constant 0 : i32
    %51 = arith.cmpi ne, %50, %c0_i32_22 : i32
    scf.if %51 {
      %c0_23 = arith.constant 0 : index
      %c0_24 = arith.constant 0 : index
      %52 = vector.load %arg6[%c0_23, %c0_24] : memref<8x128xf32, #tpu.memory_space<vmem>>, vector<8x128xf32>
      %53 = vector.shape_cast %52 : vector<8x128xf32> to vector<1x8x128xf32>
      %cst_25 = arith.constant dense<0.000000e+00> : vector<1xf32>
      %54 = vector.multi_reduction <add>, %53, %cst_25 [1, 2] : vector<1x8x128xf32> to vector<1xf32>
      %55 = vector.shape_cast %54 : vector<1xf32> to vector<1x1x1xf32>
      %56 = vector.extract %55[0, 0, 0] : f32 from vector<1x1x1xf32>
      %57 = tpu.iota {dimensions = array<i32: 0>} : vector<8x128xi32>
      %58 = tpu.iota {dimensions = array<i32: 1>} : vector<8x128xi32>
      %c0_i32_26 = arith.constant 0 : i32
      %59 = vector.broadcast %c0_i32_26 : i32 to vector<8x128xi32>
      %60 = arith.cmpi eq, %57, %59 : vector<8x128xi32>
      %c0_i32_27 = arith.constant 0 : i32
      %61 = vector.broadcast %c0_i32_27 : i32 to vector<8x128xi32>
      %62 = arith.cmpi eq, %58, %61 : vector<8x128xi32>
      %63 = arith.andi %60, %62 : vector<8x128xi1>
      %cst_28 = arith.constant 0.000000e+00 : f32
      %64 = vector.broadcast %56 : f32 to vector<8x128xf32>
      %65 = vector.broadcast %cst_28 : f32 to vector<8x128xf32>
      %66 = arith.select %63, %64, %65 : vector<8x128xi1>, vector<8x128xf32>
      %c0_29 = arith.constant 0 : index
      %c0_30 = arith.constant 0 : index
      %67 = vector.load %arg5[%c0_29, %c0_30] : memref<8x128xf32, #tpu.memory_space<vmem>>, vector<8x128xf32>
      tpu.vector_store %arg5[%c0_29, %c0_30], %66 {strides = array<i32>} : memref<8x128xf32, #tpu.memory_space<vmem>>, vector<8x128xf32>,
    } else {
    }
    return
  }
  func.func @transform_0(%arg0: i32, %arg1: i32, %arg2: i32) -> (i32, i32) {
    %c1_i32 = arith.constant 1 : i32
    %0 = arith.muli %arg0, %c1_i32 : i32
    %1 = arith.addi %0, %arg1 : i32
    %c0_i32 = arith.constant 0 : i32
    return %1, %arg2 : i32, i32
  }
  func.func @transform_1(%arg0: i32, %arg1: i32, %arg2: i32) -> (i32, i32) {
    %c1_i32 = arith.constant 1 : i32
    %0 = arith.muli %arg0, %c1_i32 : i32
    %1 = arith.addi %0, %arg1 : i32
    %c0_i32 = arith.constant 0 : i32
    return %1, %arg2 : i32, i32
  }
  func.func @transform_2(%arg0: i32, %arg1: i32, %arg2: i32) -> (i32, i32) {
    %c0_i32 = arith.constant 0 : i32
    %c0_i32_0 = arith.constant 0 : i32
    return %arg0, %c0_i32 : i32, i32
  }
}

</mosaic_0001>

<llo_original>
// kernel: tpu_custom_call.1
$region0: #{tpu_custom_call.1}
  #allocation0 [shape = 'u32[]', space=smem, size = 0x4, offset = 0x4, fixed_abs, tag = 'smem constant byte address 0x4 - core index']
  #allocation1 [shape = 'u32[72,128]{1,0:T(1,128)}', space=vmem, size = 0x9000, scoped, tag = 'internal scratch']
  #allocation2 [shape = 'f32[8,128]{1,0:T(8,128)}', space=vmem, size = 0x1000, scoped, tag = 'scratch operand']
  %s0 = inlined_call_operand.hbm [shape: f32[32,128], index: 0, kind: input, shape index: {}]
  %s1 = inlined_call_operand.hbm [shape: f32[32,128], index: 1, kind: input, shape index: {}]
  %s2 = inlined_call_operand.hbm [shape: f32[8,128], index: 2, kind: output, shape index: {}]
  %s3 = sld [smem:[#allocation0]]
  $region34: #{tpu_custom_call.1} parent=0
    _
  %s5 = ssub.s32 1, %s3
  %s6 = scalar_select 0, %s5, %s3
  $region1: #{tpu_custom_call.1} parent=0
    #allocation3 [shape = 'u8[16384]{0}', space=vmem, size = 0x4000, scoped, tag = 'input window, operand 0, single buffered']
    #allocation4 [shape = 's32[1]{0}', space=sflag, size = 0x4, scoped, tag = 'scoped memory for tpu_custom_call.1']
    #allocation5 [shape = 's32[1]{0}', space=sflag, size = 0x4, scoped, tag = 'scoped memory for tpu_custom_call.1']
    #allocation6 [shape = 'u8[16384]{0}', space=vmem, size = 0x4000, scoped, tag = 'input window, operand 1, single buffered']
    #allocation7 [shape = 's32[1]{0}', space=sflag, size = 0x4, scoped, tag = 'scoped memory for tpu_custom_call.1']
    #allocation8 [shape = 'u8[4096]{0}', space=vmem, size = 0x1000, scoped, tag = 'output window, operand 0, single buffered']
    %7 = vsyncpa [#allocation4], 0
    %8 = vsyncpa [#allocation7], 0
    %9 = vsyncpa [#allocation5], 0
    // Predicated region
    $region2: #{tpu_custom_call.1} parent=1 // pred_check
      _
    $region3: #{tpu_custom_call.1} parent=1 // pred_check_branch
      %11 = sbr.rel (0) target = $region5
    $region4: #{tpu_custom_call.1} parent=1 // pred_region
      %s12 = sadd.s32 0, 0
      %s13 = smul.u32 4, %s12
      %15 = vsyncadd [#allocation4], 0
      %s16 = smul.addr %s13, 8
      %s17 = scalar_lea.hbm %s0, %s16
      %s18 = sshll.u32 %s17, 4
      %s19 = int_to_ptr.hbm [resolvable:$true] %s18
      %s20 = sshll.u32 [#allocation3], 4
      %s21 = int_to_ptr.vmem [resolvable:$true] %s20
      %26 = dma.hbm_to_vmem [thread:$0]  %s19, 512, %s21, [#allocation4], 128, 128, 8
    $region5: #{tpu_custom_call.1} parent=1 // pred_fallthru
      _
    // Predicated region
    $region6: #{tpu_custom_call.1} parent=1 // pred_check
      _
    $region7: #{tpu_custom_call.1} parent=1 // pred_check_branch
      %28 = sbr.rel (0) target = $region9
    $region8: #{tpu_custom_call.1} parent=1 // pred_region
      %s29 = sadd.s32 0, 0
      %s30 = smul.u32 4, %s29
      %32 = vsyncadd [#allocation7], 0
      %s33 = smul.addr %s30, 8
      %s34 = scalar_lea.hbm %s1, %s33
      %s35 = sshll.u32 %s34, 4
      %s36 = int_to_ptr.hbm [resolvable:$true] %s35
      %s37 = sshll.u32 [#allocation6], 4
      %s38 = int_to_ptr.vmem [resolvable:$true] %s37
      %43 = dma.hbm_to_vmem [thread:$0]  %s36, 512, %s38, [#allocation7], 128, 128, 8
    $region9: #{tpu_custom_call.1} parent=1 // pred_fallthru
      _
    // Predicated region
    $region10: #{tpu_custom_call.1} parent=1 // pred_check
      _
    $region11: #{tpu_custom_call.1} parent=1 // pred_check_branch
      %45 = sbr.rel (0) target = $region13
    $region12: #{tpu_custom_call.1} parent=1 // pred_region
      %47 = dma.done [#allocation4], 512
    $region13: #{tpu_custom_call.1} parent=1 // pred_fallthru
      _
    // Predicated region
    $region14: #{tpu_custom_call.1} parent=1 // pred_check
      _
    $region15: #{tpu_custom_call.1} parent=1 // pred_check_branch
      %49 = sbr.rel (0) target = $region17
    $region16: #{tpu_custom_call.1} parent=1 // pred_region
      %51 = dma.done [#allocation7], 512
    $region17: #{tpu_custom_call.1} parent=1 // pred_fallthru
      _
    %s52 = sadd.s32 0, 0
    %s53 = smul.u32 4, %s52
    %s54 = sadd.s32 0, 0
    %s55 = smul.u32 4, %s54
    %p56 = scmp.eq.s32.totalorder 0, 0
    %p57 = scmp.eq.s32.totalorder 0, 0
    %p58 = pnand %p56, %p57
    %p59 = pneg %p58
    // Predicated region
    $region18: #{tpu_custom_call.1} parent=1 // pred_check
      _
    $region19: #{tpu_custom_call.1} parent=1 // pred_check_branch
      %61 = sbr.rel (%p58) target = $region21
    $region20: #{tpu_custom_call.1} parent=1 // pred_region
      %62 = vst [vmem:[#allocation2] sm:$0xff] 0.0
    $region21: #{tpu_custom_call.1} parent=1 // pred_fallthru
      _
    %v63 = vld [vmem:[#allocation3] sm:$0xff]
    %v64 = vld [vmem:[#allocation3 + $0x8] sm:$0xff]
    %v65 = vld [vmem:[#allocation3 + $0x10] sm:$0xff]
    %v66 = vld [vmem:[#allocation3 + $0x18] sm:$0xff]
    %v67 = vld [vmem:[#allocation6] sm:$0xff]
    %v68 = vld [vmem:[#allocation6 + $0x8] sm:$0xff]
    %v69 = vld [vmem:[#allocation6 + $0x10] sm:$0xff]
    %v70 = vld [vmem:[#allocation6 + $0x18] sm:$0xff]
    %v71 = vmax.f32 %v63, -88.0
    %v72 = vmax.f32 %v64, -88.0
    %v73 = vmax.f32 %v65, -88.0
    %v74 = vmax.f32 %v66, -88.0
    %v75 = vsub.f32 0.0, %v71
    %v76 = vsub.f32 0.0, %v72
    %v77 = vsub.f32 0.0, %v73
    %v78 = vsub.f32 0.0, %v74
    %v79 = vmul.f32 %v75, 1.442695
    %v80 = vpow.pop %v79
    %v81 = vmul.f32 %v76, 1.442695
    %v82 = vpow.pop %v81
    %v83 = vmul.f32 %v77, 1.442695
    %v84 = vpow.pop %v83
    %v85 = vmul.f32 %v78, 1.442695
    %v86 = vpow.pop %v85
    %v87 = vadd.f32 %v80, 1.0
    %v88 = vadd.f32 %v82, 1.0
    %v89 = vadd.f32 %v84, 1.0
    %v90 = vadd.f32 %v86, 1.0
    %v91 = vrcp.pop %v87
    %v92 = vrcp.pop %v88
    %v93 = vrcp.pop %v89
    %v94 = vrcp.pop %v90
    %v95 = vmul.f32 %v87, %v91
    %v96 = vmul.f32 %v88, %v92
    %v97 = vmul.f32 %v89, %v93
    %v98 = vmul.f32 %v90, %v94
    %v99 = vsub.f32 2.0, %v95
    %v100 = vsub.f32 2.0, %v96
    %v101 = vsub.f32 2.0, %v97
    %v102 = vsub.f32 2.0, %v98
    %v103 = vmul.f32 %v91, %v99
    %v104 = vmul.f32 %v92, %v100
    %v105 = vmul.f32 %v93, %v101
    %v106 = vmul.f32 %v94, %v102
    %v107 = vsub.f32 1.0, %v103
    %v108 = vsub.f32 1.0, %v104
    %v109 = vsub.f32 1.0, %v105
    %v110 = vsub.f32 1.0, %v106
    %v111 = vadd.f32 %v107, 0.05
    %v112 = vadd.f32 %v108, 0.05
    %v113 = vadd.f32 %v109, 0.05
    %v114 = vadd.f32 %v110, 0.05
    %v115 = vmin.f32 %v111, 1.0
    %v116 = vmin.f32 %v112, 1.0
    %v117 = vmin.f32 %v113, 1.0
    %v118 = vmin.f32 %v114, 1.0
    %v119 = vsub.f32 1.0, %v115
    %v120 = vsub.f32 1.0, %v116
    %v121 = vsub.f32 1.0, %v117
    %v122 = vsub.f32 1.0, %v118
    %v123 = vmul.f32 %v119, %v119
    %v124 = vmul.f32 %v120, %v120
    %v125 = vmul.f32 %v121, %v121
    %v126 = vmul.f32 %v122, %v122
    %v127 = vmul.f32 %v123, %v123
    %v128 = vmul.f32 %v124, %v124
    %v129 = vmul.f32 %v125, %v125
    %v130 = vmul.f32 %v126, %v126
    %v131 = vmax.f32 %v103, 1e-08
    %v132 = vmax.f32 %v104, 1e-08
    %v133 = vmax.f32 %v105, 1e-08
    %v134 = vmax.f32 %v106, 1e-08
    %v135 = vlog2.pop %v131
    %v136 = vmul.f32 %v135, 0.6931472
    %v137 = vlog2.pop %v132
    %v138 = vmul.f32 %v137, 0.6931472
    %v139 = vlog2.pop %v133
    %v140 = vmul.f32 %v139, 0.6931472
    %v141 = vlog2.pop %v134
    %v142 = vmul.f32 %v141, 0.6931472
    %v143 = vmul.f32 %v67, %v136
    %v144 = vmul.f32 %v68, %v138
    %v145 = vmul.f32 %v69, %v140
    %v146 = vmul.f32 %v70, %v142
    %v147 = vsub.f32 1.0, %v67
    %v148 = vsub.f32 1.0, %v68
    %v149 = vsub.f32 1.0, %v69
    %v150 = vsub.f32 1.0, %v70
    %v151 = vmax.f32 %v115, 1e-08
    %v152 = vmax.f32 %v116, 1e-08
    %v153 = vmax.f32 %v117, 1e-08
    %v154 = vmax.f32 %v118, 1e-08
    %v155 = vlog2.pop %v151
    %v156 = vmul.f32 %v155, 0.6931472
    %v157 = vlog2.pop %v152
    %v158 = vmul.f32 %v157, 0.6931472
    %v159 = vlog2.pop %v153
    %v160 = vmul.f32 %v159, 0.6931472
    %v161 = vlog2.pop %v154
    %v162 = vmul.f32 %v161, 0.6931472
    %v163 = vmul.f32 %v147, %v156
    %v164 = vmul.f32 %v148, %v158
    %v165 = vmul.f32 %v149, %v160
    %v166 = vmul.f32 %v150, %v162
    %v167 = vmul.f32 %v107, %v143
    %v168 = vmul.f32 %v108, %v144
    %v169 = vmul.f32 %v109, %v145
    %v170 = vmul.f32 %v110, %v146
    %v171 = vmul.f32 %v127, %v163
    %v172 = vmul.f32 %v128, %v164
    %v173 = vmul.f32 %v129, %v165
    %v174 = vmul.f32 %v130, %v166
    %v175 = vadd.f32 %v167, %v171
    %v176 = vadd.f32 %v168, %v172
    %v177 = vadd.f32 %v169, %v173
    %v178 = vadd.f32 %v170, %v174
    %v179 = vld [vmem:[#allocation2] sm:$0xff]
    %v180 = vadd.f32 %v175, %v176
    %v181 = vadd.f32 %v180, %v177
    %v182 = vadd.f32 %v181, %v178
    %v183 = vadd.f32 %v179, %v182
    %184 = vst [vmem:[#allocation2] sm:$0xff] %v183
    // Predicated region
    $region22: #{tpu_custom_call.1} parent=1 // pred_check
      _
    $region23: #{tpu_custom_call.1} parent=1 // pred_check_branch
      %186 = sbr.rel (%p58) target = $region25
    $region24: #{tpu_custom_call.1} parent=1 // pred_region
      %v187 = vld [vmem:[#allocation2] sm:$0xff]
      %188 = vadd.xlane.f32.xlu0 %v187
      %v189 = vpop.xlane.xlu0 %188
      %v190 = vrot.slane %v189, 4
      %v191 = vadd.f32 %v189, %v190
      %v192 = vrot.slane %v191, 2
      %v193 = vadd.f32 %v191, %v192
      %v194 = vrot.slane %v193, 1
      %v195 = vadd.f32 %v193, %v194
      %s196 = vtos %v195
      %v197 = vlaneseq
      %v198 = vshrl.u32 %v197, 7
      %v199 = vlaneseq
      %v200 = vand.u32 %v199, 127
      %vm201 = vcmp.eq.s32.totalorder %v198, 0
      %vm202 = vcmp.eq.s32.totalorder %v200, 0
      %vm203 = vmand %vm201, %vm202
      %v204 = vstv %s196
      %v205 = vsel %vm203, %v204, 0.0
      %206 = vst [vmem:[#allocation8] sm:$0xff] %v205
    $region25: #{tpu_custom_call.1} parent=1 // pred_fallthru
      _
    // Predicated region
    $region26: #{tpu_custom_call.1} parent=1 // pred_check
      _
    $region27: #{tpu_custom_call.1} parent=1 // pred_check_branch
      %208 = sbr.rel (0) target = $region29
    $region28: #{tpu_custom_call.1} parent=1 // pred_region
      %210 = vsyncadd [#allocation5], 0
      %s212 = sshll.u32 [#allocation8], 4
      %s213 = int_to_ptr.vmem [resolvable:$true] %s212
      %s214 = sshll.u32 %s2, 4
      %s215 = int_to_ptr.hbm [resolvable:$true] %s214
      %217 = dma.vmem_to_hbm [thread:$0]  %s213, 128, %s215, [#allocation5]
    $region29: #{tpu_custom_call.1} parent=1 // pred_fallthru
      _
    // Predicated region
    $region30: #{tpu_custom_call.1} parent=1 // pred_check
      _
    $region31: #{tpu_custom_call.1} parent=1 // pred_check_branch
      %219 = sbr.rel (0) target = $region33
    $region32: #{tpu_custom_call.1} parent=1 // pred_region
      %221 = dma.done [#allocation5], 128
    $region33: #{tpu_custom_call.1} parent=1 // pred_fallthru
      _
    %222 = vsyncpa [#allocation4], 1
    %223 = vsyncpa [#allocation7], 1
    %224 = vsyncpa [#allocation5], 1

</llo_original>
